<compile_context>
chip_gen: v7x
topology: tpu7x:2x2x1
jax: 0.10.0
libtpu: 0.0.40
codegen_flags: <defaults>
</compile_context>

<pallas_src>
import jax
import jax.numpy as jnp
from jax.experimental import pallas as pl
from jax.experimental.pallas import tpu as pltpu


def _convt1x1_where_kernel(x_ref, w_ref, b_ref, o_ref):
    # x_ref : (tile_N, 1, tile_L)      one input channel, L-tile on lanes
    # w_ref : (C_out, 1)               per-output-channel scale
    # b_ref : (C_out, 1)               per-output-channel bias
    # o_ref : (tile_N, C_out, tile_L)
    x = x_ref[...]                      # (tile_N, 1, tile_L)
    w = w_ref[...][None, :, :]          # (1, C_out, 1)
    b = b_ref[...][None, :, :]          # (1, C_out, 1)
    y = w * x + b                       # broadcast -> (tile_N, C_out, tile_L), pure VPU
    # where(y > 0, y*2, y/2) fused as y * select(y>0, 2, 0.5); x0.5 is an exact
    # power-of-two scale so this is bit-identical (0/NaN/inf handled the same).
    o_ref[...] = y * jnp.where(y > 0.0, 2.0, 0.5)


def _round_up(v, m):
    return (v + m - 1) // m * m


def convtranspose1d_k1_where(x, weight, bias, *,
                             target_bytes=8 << 20,      # ~8 MB of output per grid step
                             max_tile_l=64 * 1024):     # cap on lane-tile (multiple of 128)
    """
    x      : (N, 1, L)       float32  (PyTorch NCL input)
    weight : (C_in=1, C_out, 1) float32  (ConvTranspose1d weight layout)
    bias   : (C_out,)        float32
    returns: (N, C_out, L)   float32  (matches PyTorch output layout directly)
    """
    N, C_in, L = x.shape
    assert C_in == 1
    C_out = weight.shape[1]

    w_col = weight.reshape(C_out, 1)   # (C_out, 1) column -> lane-broadcast in kernel
    b_col = bias.reshape(C_out, 1)     # (C_out, 1)

    row_bytes = C_out * L * 4          # output bytes for one (C_out, L) slab

    if row_bytes >= target_bytes:
        # L alone gives big blocks: tile over L only (tile_L multiple of 128).
        tile_N = 1
        tile_L = L if L <= max_tile_l else max_tile_l
    else:
        # Small/medium L: take full (C_out, L) rows (one long contiguous HBM write
        # per batch row) and block over batch to reach the byte target.
        tile_L = L
        tile_N = min(N, max(1, -(-target_bytes // row_bytes)))

    grid_n = pl.cdiv(N, tile_N)
    grid_l = pl.cdiv(L, tile_L)
    # v7x: keep the parallel grid non-degenerate so both TensorCores get work.
    if grid_n * grid_l < 2 and N >= 2:
        tile_N = -(-N // 2)
        grid_n = pl.cdiv(N, tile_N)

    grid = (grid_n, grid_l)

    # Double-buffered VMEM footprint (sublane-padded) -> explicit scoped limit.
    out_buf = 2 * tile_N * _round_up(C_out, 8) * tile_L * 4
    in_buf = 2 * tile_N * 8 * tile_L * 4
    vmem_limit = min(64 << 20, max(32 << 20, int((out_buf + in_buf) * 3 // 2)))

    out = pl.pallas_call(
        _convt1x1_where_kernel,
        out_shape=jax.ShapeDtypeStruct((N, C_out, L), jnp.float32),
        grid=grid,
        in_specs=[
            # x: tile_N batch rows, one L-tile per grid step (lane-dense).
            pl.BlockSpec((tile_N, 1, tile_L), lambda n, l: (n, 0, l)),
            # weight / bias: tiny constant blocks, fetched once (constant index_map).
            pl.BlockSpec((C_out, 1), lambda n, l: (0, 0)),
            pl.BlockSpec((C_out, 1), lambda n, l: (0, 0)),
        ],
        # Output emitted directly in (N, C_out, L): lane-dense unmasked stores,
        # full (C_out, L) slabs when tile_L == L -> single long write per row.
        out_specs=pl.BlockSpec((tile_N, C_out, tile_L), lambda n, l: (n, 0, l)),
        compiler_params=pltpu.CompilerParams(
            dimension_semantics=("parallel", "parallel"),
            vmem_limit_bytes=vmem_limit,
        ),
    )(x, w_col, b_col)

    return out


if __name__ == "__main__":
    key = jax.random.PRNGKey(0)
    kx, kw, kb = jax.random.split(key, 3)

    N, C_in, L, C_out = 2, 1, 16, 20
    x = jax.random.normal(kx, (N, C_in, L), dtype=jnp.float32)

    # ConvTranspose1d(1, 20, 1) parameter shapes (in_channels, out_channels, k);
    # PyTorch default init is uniform(-1/sqrt(fan), 1/sqrt(fan)) with fan = C_in*k = 1.
    weight = jax.random.uniform(kw, (C_in, C_out, 1), dtype=jnp.float32,
                                minval=-1.0, maxval=1.0)
    bias = jax.random.uniform(kb, (C_out,), dtype=jnp.float32,
                              minval=-1.0, maxval=1.0)

    out = convtranspose1d_k1_where(x, weight, bias)
    jax.block_until_ready(out)

    # Plain-JAX reference of the PyTorch forward pass.
    y_ref = x[:, 0, :][:, None, :] * weight.reshape(1, C_out, 1) + bias[None, :, None]
    ref = jnp.where(y_ref > 0, y_ref * 2.0, y_ref / 2.0)

    assert out.shape == (N, C_out, L)
    assert jnp.allclose(out, ref, atol=1e-5, rtol=1e-5)

    print("KERNEL_OK")
</pallas_src>

<mosaic_0001>
module attributes {stable_mosaic.version = 11 : i64} {
  func.func @_convt1x1_where_kernel(%arg0: i32, %arg1: i32, %arg2: memref<1x1x16xf32, #tpu.memory_space<vmem>>, %arg3: memref<20x1xf32, #tpu.memory_space<vmem>>, %arg4: memref<20x1xf32, #tpu.memory_space<vmem>>, %arg5: memref<1x20x16xf32, #tpu.memory_space<vmem>>) attributes {dimension_semantics = [#tpu.dimension_semantics<parallel>, #tpu.dimension_semantics<parallel>], iteration_bounds = array<i64: 2, 1>, scalar_prefetch = 0 : i64, scratch_operands = 0 : i64, tpu.core_type = #tpu.core_type<tc>, window_params = [{transform_indices = @transform_0, window_bounds = array<i64: 1, 1, 16>}, {pipeline_mode = #tpu.pipeline_mode<synchronous>, transform_indices = @transform_1, window_bounds = array<i64: 20, 1>}, {pipeline_mode = #tpu.pipeline_mode<synchronous>, transform_indices = @transform_2, window_bounds = array<i64: 20, 1>}, {transform_indices = @transform_3, window_bounds = array<i64: 1, 20, 16>}]} {
    %c0 = arith.constant 0 : index
    %c0_0 = arith.constant 0 : index
    %c0_1 = arith.constant 0 : index
    %0 = vector.load %arg2[%c0, %c0_0, %c0_1] : memref<1x1x16xf32, #tpu.memory_space<vmem>>, vector<1x1x16xf32>
    %c0_2 = arith.constant 0 : index
    %c0_3 = arith.constant 0 : index
    %1 = vector.load %arg3[%c0_2, %c0_3] : memref<20x1xf32, #tpu.memory_space<vmem>>, vector<20x1xf32>
    %2 = vector.shape_cast %1 : vector<20x1xf32> to vector<1x20x1xf32>
    %c0_4 = arith.constant 0 : index
    %c0_5 = arith.constant 0 : index
    %3 = vector.load %arg4[%c0_4, %c0_5] : memref<20x1xf32, #tpu.memory_space<vmem>>, vector<20x1xf32>
    %4 = vector.shape_cast %3 : vector<20x1xf32> to vector<1x20x1xf32>
    %5 = vector.broadcast %2 : vector<1x20x1xf32> to vector<1x20x16xf32>
    %6 = vector.broadcast %0 : vector<1x1x16xf32> to vector<1x20x16xf32>
    %7 = arith.mulf %5, %6 : vector<1x20x16xf32>
    %8 = vector.broadcast %4 : vector<1x20x1xf32> to vector<1x20x16xf32>
    %9 = arith.addf %7, %8 : vector<1x20x16xf32>
    %cst = arith.constant 0.000000e+00 : f32
    %10 = vector.broadcast %cst : f32 to vector<1x20x16xf32>
    %11 = arith.cmpf ogt, %9, %10 : vector<1x20x16xf32>
    %cst_6 = arith.constant 2.000000e+00 : f32
    %cst_7 = arith.constant 5.000000e-01 : f32
    %12 = vector.broadcast %cst_6 : f32 to vector<1x20x16xf32>
    %13 = vector.broadcast %cst_7 : f32 to vector<1x20x16xf32>
    %14 = arith.select %11, %12, %13 : vector<1x20x16xi1>, vector<1x20x16xf32>
    %15 = arith.mulf %9, %14 : vector<1x20x16xf32>
    %c0_8 = arith.constant 0 : index
    %c0_9 = arith.constant 0 : index
    %c0_10 = arith.constant 0 : index
    %16 = vector.load %arg5[%c0_8, %c0_9, %c0_10] : memref<1x20x16xf32, #tpu.memory_space<vmem>>, vector<1x20x16xf32>
    tpu.vector_store %arg5[%c0_8, %c0_9, %c0_10], %15 {strides = array<i32>} : memref<1x20x16xf32, #tpu.memory_space<vmem>>, vector<1x20x16xf32>,
    return
  }
  func.func @transform_0(%arg0: i32, %arg1: i32) -> (i32, i32, i32) {
    %c0_i32 = arith.constant 0 : i32
    %c0_i32_0 = arith.constant 0 : i32
    return %arg0, %c0_i32, %arg1 : i32, i32, i32
  }
  func.func @transform_1(%arg0: i32, %arg1: i32) -> (i32, i32) {
    %c0_i32 = arith.constant 0 : i32
    %c0_i32_0 = arith.constant 0 : i32
    %c0_i32_1 = arith.constant 0 : i32
    return %c0_i32, %c0_i32_0 : i32, i32
  }
  func.func @transform_2(%arg0: i32, %arg1: i32) -> (i32, i32) {
    %c0_i32 = arith.constant 0 : i32
    %c0_i32_0 = arith.constant 0 : i32
    %c0_i32_1 = arith.constant 0 : i32
    return %c0_i32, %c0_i32_0 : i32, i32
  }
  func.func @transform_3(%arg0: i32, %arg1: i32) -> (i32, i32, i32) {
    %c0_i32 = arith.constant 0 : i32
    %c0_i32_0 = arith.constant 0 : i32
    return %arg0, %c0_i32, %arg1 : i32, i32, i32
  }
}

</mosaic_0001>

<llo_original>
// kernel: tpu_custom_call.1
$region0: #{tpu_custom_call.1}
  #allocation0 [shape = 'u32[]', space=smem, size = 0x4, offset = 0x4, fixed_abs, tag = 'smem constant byte address 0x4 - core index']
  #allocation1 [shape = 'u32[144,128]{1,0:T(1,128)}', space=vmem, size = 0x12000, scoped, tag = 'internal scratch']
  %s0 = inlined_call_operand.vmem [shape: f32[2,1,16], index: 0, kind: input, shape index: {}]
  %s1 = inlined_call_operand.vmem [shape: f32[20,1], index: 1, kind: input, shape index: {}]
  %s2 = inlined_call_operand.vmem [shape: f32[20,1], index: 2, kind: input, shape index: {}]
  %s3 = inlined_call_operand.vmem [shape: f32[2,20,16], index: 3, kind: output, shape index: {}]
  %s4 = sld [smem:[#allocation0]]
  $region45: #{tpu_custom_call.1} parent=0
    _
  %s6 = ssub.s32 1, %s4
  %s7 = scalar_select 0, %s6, %s4
  loop: start=0, step=1, limit=4
  $region2: #{tpu_custom_call.1} parent=0 // loop_pre_header
    _
  $region3: #{tpu_custom_call.1} parent=0 // loop_header
    %s9 = sphi 0, %s13
    %p10 = scmp.ge.s32.totalorder %s9, 4
    %s16 = sphi 0, %s28
    %s17 = sphi 0, %s24
    %s18 = sphi 0, %s16
    %s19 = sphi 0, %s17
    %s20 = sphi 0, %s18
    %s21 = sphi 0, %s19
    %s33 = sphi 0, %s35
    %s36 = sphi 0, %s33
    %s37 = sphi 0, %s36
    %s53 = sphi 0, %s37
    %s57 = sphi 0, %s57
    %s59 = sphi 0, %s57
    %s60 = sphi 0, %s59
    %s74 = sphi 0, %s60
    %s78 = sphi 0, %s78
    %s80 = sphi 0, %s78
    %s81 = sphi 0, %s80
    %s95 = sphi 0, %s81
    %s103 = sphi 0, %s105
    %s106 = sphi 0, %s103
    %s107 = sphi 0, %s106
    %s123 = sphi 0, %s107
  $region4: #{tpu_custom_call.1} parent=0 // loop_header_branch
    %12 = sbr.rel (%p10) target = $region8
  $region5: #{tpu_custom_call.1} parent=0 // loop_body
    %s14 = ssub.s32 %s9, 1
    %s15 = ssub.s32 %s9, 2
    %s22 = sadd.s32 1, %s17
    %p23 = scmp.ge.s32.totalorder %s22, 1
    %s24 = scalar_select %p23, 0, %s22
    %s25 = sadd.s32 1, %s16
    %s26 = scalar_select %p23, %s25, %s16
    %p27 = scmp.ge.s32.totalorder %s26, 2
    %s28 = scalar_select %p27, 0, %s26
    %s29 = ssub.s32 %s16, %s28
    %s30 = ssub.s32 %s17, %s24
    %s31 = sor.u32 %s29, %s30
    %p32 = scmp.eq.s32.totalorder %s31, 0
    %s34 = sadd.s32 %s33, 1
    %s35 = scalar_select %p32, %s33, %s34
    %p38 = pneg %p32
    %p39 = scmp.eq.s32.totalorder %s9, 1
    %p40 = por %p38, %p39
    %p41 = scmp.ne.s32.totalorder %s33, %s36
    %p42 = scmp.eq.s32.totalorder %s9, 0
    %p43 = por %p41, %p42
    %p44 = scmp.ne.s32.totalorder %s33, %s36
    %p45 = scmp.eq.s32.totalorder %s14, 1
    %p46 = por %p44, %p45
    %p47 = scmp.ne.s32.totalorder %s36, %s37
    %p48 = scmp.eq.s32.totalorder %s14, 0
    %p49 = por %p47, %p48
    %p50 = scmp.ne.s32.totalorder %s36, %s37
    %p51 = scmp.eq.s32.totalorder %s15, 1
    %p52 = por %p50, %p51
    %p54 = scmp.ne.s32.totalorder %s37, %s53
    %p55 = scmp.eq.s32.totalorder %s15, 0
    %p56 = por %p54, %p55
    %s58 = sadd.s32 %s57, 1
    %p61 = scmp.eq.s32.totalorder %s9, 1
    %p62 = scmp.ne.s32.totalorder %s57, %s59
    %p63 = scmp.eq.s32.totalorder %s9, 0
    %p64 = por %p62, %p63
    %p65 = scmp.ne.s32.totalorder %s57, %s59
    %p66 = scmp.eq.s32.totalorder %s14, 1
    %p67 = por %p65, %p66
    %p68 = scmp.ne.s32.totalorder %s59, %s60
    %p69 = scmp.eq.s32.totalorder %s14, 0
    %p70 = por %p68, %p69
    %p71 = scmp.ne.s32.totalorder %s59, %s60
    %p72 = scmp.eq.s32.totalorder %s15, 1
    %p73 = por %p71, %p72
    %p75 = scmp.ne.s32.totalorder %s60, %s74
    %p76 = scmp.eq.s32.totalorder %s15, 0
    %p77 = por %p75, %p76
    %s79 = sadd.s32 %s78, 1
    %p82 = scmp.eq.s32.totalorder %s9, 1
    %p83 = scmp.ne.s32.totalorder %s78, %s80
    %p84 = scmp.eq.s32.totalorder %s9, 0
    %p85 = por %p83, %p84
    %p86 = scmp.ne.s32.totalorder %s78, %s80
    %p87 = scmp.eq.s32.totalorder %s14, 1
    %p88 = por %p86, %p87
    %p89 = scmp.ne.s32.totalorder %s80, %s81
    %p90 = scmp.eq.s32.totalorder %s14, 0
    %p91 = por %p89, %p90
    %p92 = scmp.ne.s32.totalorder %s80, %s81
    %p93 = scmp.eq.s32.totalorder %s15, 1
    %p94 = por %p92, %p93
    %p96 = scmp.ne.s32.totalorder %s81, %s95
    %p97 = scmp.eq.s32.totalorder %s15, 0
    %p98 = por %p96, %p97
    %s99 = ssub.s32 %s16, %s28
    %s100 = ssub.s32 %s17, %s24
    %s101 = sor.u32 %s99, %s100
    %p102 = scmp.eq.s32.totalorder %s101, 0
    %s104 = sadd.s32 %s103, 1
    %s105 = scalar_select %p102, %s103, %s104
    %p108 = pneg %p102
    %p109 = scmp.eq.s32.totalorder %s9, 1
    %p110 = por %p108, %p109
    %p111 = scmp.ne.s32.totalorder %s103, %s106
    %p112 = scmp.eq.s32.totalorder %s9, 0
    %p113 = por %p111, %p112
    %p114 = scmp.ne.s32.totalorder %s103, %s106
    %p115 = scmp.eq.s32.totalorder %s14, 1
    %p116 = por %p114, %p115
    %p117 = scmp.ne.s32.totalorder %s106, %s107
    %p118 = scmp.eq.s32.totalorder %s14, 0
    %p119 = por %p117, %p118
    %p120 = scmp.ne.s32.totalorder %s106, %s107
    %p121 = scmp.eq.s32.totalorder %s15, 1
    %p122 = por %p120, %p121
    %p124 = scmp.ne.s32.totalorder %s107, %s123
    %p125 = scmp.eq.s32.totalorder %s15, 0
    %p126 = por %p124, %p125
    %p127 = scmp.le.s32.totalorder 1, %s9
    %p128 = scmp.lt.s32.totalorder %s9, 3
    %p129 = pnand %p127, %p128
    %p130 = pneg %p129
    // Predicated region
    $region9: #{tpu_custom_call.1} parent=5 // pred_check
      _
    $region10: #{tpu_custom_call.1} parent=5 // pred_check_branch
      %132 = sbr.rel (%p129) target = $region12
    $region11: #{tpu_custom_call.1} parent=5 // pred_region
      %s133 = ssub.s32 %s9, 1
      // Predicated region
      $region13: #{tpu_custom_call.1} parent=11 // pred_check
        %p134 = pneg %p70
      $region14: #{tpu_custom_call.1} parent=11 // pred_check_branch
        %136 = sbr.rel (%p134) target = $region16
      $region15: #{tpu_custom_call.1} parent=11 // pred_region
        _
      $region16: #{tpu_custom_call.1} parent=11 // pred_fallthru
        _
      // Predicated region
      $region17: #{tpu_custom_call.1} parent=11 // pred_check
        %p137 = pneg %p91
      $region18: #{tpu_custom_call.1} parent=11 // pred_check_branch
        %139 = sbr.rel (%p137) target = $region20
      $region19: #{tpu_custom_call.1} parent=11 // pred_region
        _
      $region20: #{tpu_custom_call.1} parent=11 // pred_fallthru
        _
    $region12: #{tpu_custom_call.1} parent=5 // pred_fallthru
      _
    %p140 = scmp.lt.s32.totalorder %s9, 2
    // Predicated region
    $region21: #{tpu_custom_call.1} parent=5 // pred_check
      %p141 = pneg %p140
    $region22: #{tpu_custom_call.1} parent=5 // pred_check_branch
      %143 = sbr.rel (%p141) target = $region24
    $region23: #{tpu_custom_call.1} parent=5 // pred_region
      // Predicated region
      $region25: #{tpu_custom_call.1} parent=23 // pred_check
        %p144 = pneg %p43
      $region26: #{tpu_custom_call.1} parent=23 // pred_check_branch
        %146 = sbr.rel (%p144) target = $region28
      $region27: #{tpu_custom_call.1} parent=23 // pred_region
        %p147 = scmp.lt.s32.totalorder %s16, 1
        %s148 = scalar_select %p147, %s16, 1
        %p149 = scmp.lt.s32.totalorder %s17, 0
        %s150 = scalar_select %p149, %s17, 0
        %s151 = sadd.s32 %s150, %s148
        %s152 = scalar_lea.vmem %s0, %s151
      $region28: #{tpu_custom_call.1} parent=23 // pred_fallthru
        _
    $region24: #{tpu_custom_call.1} parent=5 // pred_fallthru
      _
    %p153 = scmp.le.s32.totalorder 1, %s9
    %p154 = scmp.lt.s32.totalorder %s9, 3
    %p155 = pnand %p153, %p154
    %p156 = pneg %p155
    // Predicated region
    $region29: #{tpu_custom_call.1} parent=5 // pred_check
      _
    $region30: #{tpu_custom_call.1} parent=5 // pred_check_branch
      %158 = sbr.rel (%p155) target = $region32
    $region31: #{tpu_custom_call.1} parent=5 // pred_region
      %s159 = ssub.s32 %s9, 1
      %p160 = scmp.lt.s32.totalorder %s18, 1
      %s161 = scalar_select %p160, %s18, 1
      %p162 = scmp.lt.s32.totalorder %s19, 0
      %s163 = scalar_select %p162, %s19, 0
      %s164 = sadd.s32 %s163, %s161
      %s165 = scalar_lea.vmem %s0, %s164
      %p166 = pneg %p49
      %p167 = pneg %p46
      %p168 = pneg %p70
      %p169 = pneg %p67
      %p170 = pneg %p91
      %p171 = pneg %p88
      %p172 = pneg %p119
      %p173 = pneg %p116
      %p174 = scmp.lt.s32.totalorder %s18, 1
      %s175 = scalar_select %p174, %s18, 1
      %p176 = scmp.lt.s32.totalorder %s19, 0
      %s177 = scalar_select %p176, %s19, 0
      %s178 = smul.addr %s175, 3
      %s179 = sadd.s32 %s177, %s178
      %s180 = smul.addr %s179, 8
      %s181 = scalar_lea.vmem %s3, %s180
      %p182 = scmp.lt.s32.totalorder %s18, 1
      %s183 = scalar_select %p182, %s18, 1
      %p184 = scmp.lt.s32.totalorder %s19, 0
      %s185 = scalar_select %p184, %s19, 0
      %s186 = sadd.s32 %s185, %s183
      %s187 = scalar_lea.vmem %s0, %s186
      %p188 = scmp.lt.s32.totalorder %s18, 1
      %s189 = scalar_select %p188, %s18, 1
      %p190 = scmp.lt.s32.totalorder %s19, 0
      %s191 = scalar_select %p190, %s19, 0
      %s192 = smul.addr %s189, 3
      %s193 = sadd.s32 %s191, %s192
      %s194 = smul.addr %s193, 8
      %s195 = scalar_lea.vmem %s3, %s194
      %v196 = vld [vmem:[%s187] sm:$0x1]
      %v197 = vld [vmem:[%s1] sm:$0xff]
      %v198 = vld [vmem:[%s1 + $0x8] sm:$0xff]
      %v199 = vld [vmem:[%s1 + $0x10] sm:$0xf]
      %v200 = vld [vmem:[%s2] sm:$0xff]
      %v201 = vld [vmem:[%s2 + $0x8] sm:$0xff]
      %v202 = vld [vmem:[%s2 + $0x10] sm:$0xf]
      %204 = vset.pattern.permute.xlu0 0
      %205 = vperm.xlu0 %204, %v197
      %v206 = vpop.permute.xlu0 %205
      %209 = vset.pattern.permute.xlu0 0
      %210 = vperm.xlu0 %209, %v198
      %v211 = vpop.permute.xlu0 %210
      %214 = vset.pattern.permute.xlu0 0
      %215 = vperm.xlu0 %214, %v199
      %v216 = vpop.permute.xlu0 %215
      %v219 = vlaneseq
      %v220 = vshrl.u32 %v219, 7
      %v221 = vsub.s32 0, %v220
      %v222 = vrot.slane %v196, %v221
      %v224 = vmul.f32 %v206, %v222
      %v225 = vmul.f32 %v211, %v222
      %v226 = vmul.f32 %v216, %v222
      %228 = vset.pattern.permute.xlu0 0
      %229 = vperm.xlu0 %228, %v200
      %v230 = vpop.permute.xlu0 %229
      %233 = vset.pattern.permute.xlu0 0
      %234 = vperm.xlu0 %233, %v201
      %v235 = vpop.permute.xlu0 %234
      %238 = vset.pattern.permute.xlu0 0
      %239 = vperm.xlu0 %238, %v202
      %v240 = vpop.permute.xlu0 %239
      %v242 = vadd.f32 %v224, %v230
      %v243 = vadd.f32 %v225, %v235
      %v244 = vadd.f32 %v226, %v240
      %vm245 = vcmp.gt.f32.partialorder %v242, 0.0
      %vm246 = vcmp.gt.f32.partialorder %v243, 0.0
      %vm247 = vcmp.gt.f32.partialorder %v244, 0.0
      %v248 = vsel %vm245, 2.0, 0.5
      %v249 = vsel %vm246, 2.0, 0.5
      %v250 = vsel %vm247, 2.0, 0.5
      %v251 = vmul.f32 %v242, %v248
      %v252 = vmul.f32 %v243, %v249
      %v253 = vmul.f32 %v244, %v250
      %vm254 = vcmask 130048
      %255 = vst.msk [vmem:[%s195] sm:$0xff] %vm254, %v251
      %256 = vst.msk [vmem:[%s195 + $0x8] sm:$0xff] %vm254, %v252
      %vm257 = vcmask 125952
      %258 = vst.msk [vmem:[%s195 + $0x10] sm:$0xf] %vm257, %v253
      %p259 = scmp.lt.s32.totalorder %s18, 1
      %s260 = scalar_select %p259, %s18, 1
      %p261 = scmp.lt.s32.totalorder %s19, 0
      %s262 = scalar_select %p261, %s19, 0
      %s263 = smul.addr %s260, 3
      %s264 = sadd.s32 %s262, %s263
      %s265 = smul.addr %s264, 8
      %s266 = scalar_lea.vmem %s3, %s265
      // Predicated region
      $region33: #{tpu_custom_call.1} parent=31 // pred_check
        %p267 = pneg %p116
      $region34: #{tpu_custom_call.1} parent=31 // pred_check_branch
        %269 = sbr.rel (%p267) target = $region36
      $region35: #{tpu_custom_call.1} parent=31 // pred_region
        _
      $region36: #{tpu_custom_call.1} parent=31 // pred_fallthru
        _
    $region32: #{tpu_custom_call.1} parent=5 // pred_fallthru
      _
    %p270 = scmp.le.s32.totalorder 2, %s9
    // Predicated region
    $region37: #{tpu_custom_call.1} parent=5 // pred_check
      %p271 = pneg %p270
    $region38: #{tpu_custom_call.1} parent=5 // pred_check_branch
      %273 = sbr.rel (%p271) target = $region40
    $region39: #{tpu_custom_call.1} parent=5 // pred_region
      %s274 = ssub.s32 %s9, 2
      // Predicated region
      $region41: #{tpu_custom_call.1} parent=39 // pred_check
        %p275 = pneg %p122
      $region42: #{tpu_custom_call.1} parent=39 // pred_check_branch
        %277 = sbr.rel (%p275) target = $region44
      $region43: #{tpu_custom_call.1} parent=39 // pred_region
        %p278 = scmp.lt.s32.totalorder %s20, 1
        %s279 = scalar_select %p278, %s20, 1
        %p280 = scmp.lt.s32.totalorder %s21, 0
        %s281 = scalar_select %p280, %s21, 0
        %s282 = smul.addr %s279, 3
        %s283 = sadd.s32 %s281, %s282
        %s284 = smul.addr %s283, 8
        %s285 = scalar_lea.vmem %s3, %s284
      $region44: #{tpu_custom_call.1} parent=39 // pred_fallthru
        _
    $region40: #{tpu_custom_call.1} parent=5 // pred_fallthru
      _
  $region6: #{tpu_custom_call.1} parent=0 // loop_footer
    %s13 = sadd.s32 1, %s9
  $region7: #{tpu_custom_call.1} parent=0 // loop_footer_branch
    %8 = sbr.rel target = $region3
  $region8: #{tpu_custom_call.1} parent=0 // loop_exit
    _

</llo_original>
